<compile_context>
chip_gen: v6e
topology: v6e:2x2x1
jax: 0.10.0
libtpu: 0.0.40
codegen_flags: <defaults>
</compile_context>

<pallas_src>
import functools

import jax
import jax.numpy as jnp
from jax.experimental import pallas as pl
from jax.experimental.pallas import tpu as pltpu

BN_EPS = 1e-5


def _round_up(a, b):
    return ((a + b - 1) // b) * b


def _network3l_kernel(x_ref, w_ref, v_ref, o_ref,
                      s1_sum, s1_sq, s2_sum, s2_sq,
                      *, n_valid, tile_n):
    phase = pl.program_id(0)          # 0: stats1, 1: stats2, 2: finalize
    j = pl.program_id(1)              # batch tile index

    @pl.when(jnp.logical_and(phase == 0, j == 0))
    def _init():
        s1_sum[...] = jnp.zeros_like(s1_sum)
        s1_sq[...] = jnp.zeros_like(s1_sq)
        s2_sum[...] = jnp.zeros_like(s2_sum)
        s2_sq[...] = jnp.zeros_like(s2_sq)

    # Validity mask for zero-padded batch columns (n_valid is a trace-time int).
    col = j * tile_n + jax.lax.broadcasted_iota(jnp.int32, (1, tile_n), 1)
    valid = (col < n_valid).astype(jnp.float32)              # [1, tile]

    # Packed parameters (static slices; all tiny).
    w1 = w_ref[0:8, 0:10]            # [8, 10]   fc1 weight, [out, in]
    w2 = w_ref[8:12, 0:8]            # [4, 8]    fc2 weight
    w3t = w_ref[12:16, 0:1]          # [4, 1]    fc3 weight (transposed column)
    b1 = v_ref[0:8, 0:1]
    g1 = v_ref[0:8, 1:2]
    be1 = v_ref[0:8, 2:3]
    b2 = v_ref[0:4, 3:4]
    g2 = v_ref[0:4, 4:5]
    be2 = v_ref[0:4, 5:6]
    b3 = v_ref[0:1, 6:7]

    inv_n = 1.0 / float(n_valid)

    # Layer 1 (recomputed every phase): batch sits on the lane axis.
    x = x_ref[...]                                            # [10, tile] f32
    h1 = jnp.maximum(jnp.dot(w1, x, preferred_element_type=jnp.float32) + b1,
                     0.0)                                     # [8, tile]

    @pl.when(phase == 0)
    def _accumulate_layer1_stats():
        h1m = h1 * valid
        s1_sum[...] += jnp.sum(h1m, axis=1, keepdims=True)
        s1_sq[...] += jnp.sum(h1m * h1m, axis=1, keepdims=True)

    @pl.when(phase >= 1)
    def _phases_1_and_2():
        # Fused BatchNorm affine for layer 1 (global batch statistics).
        m1 = s1_sum[...] * inv_n
        var1 = s1_sq[...] * inv_n - m1 * m1
        a1 = g1 * jax.lax.rsqrt(var1 + BN_EPS)
        c1 = be1 - m1 * a1
        h1n = h1 * a1 + c1                                    # [8, tile]

        h2 = jnp.maximum(
            jnp.dot(w2, h1n, preferred_element_type=jnp.float32) + b2, 0.0)

        @pl.when(phase == 1)
        def _accumulate_layer2_stats():
            h2m = h2 * valid
            s2_sum[...] += jnp.sum(h2m, axis=1, keepdims=True)
            s2_sq[...] += jnp.sum(h2m * h2m, axis=1, keepdims=True)

        @pl.when(phase == 2)
        def _finalize():
            m2 = s2_sum[...] * inv_n
            var2 = s2_sq[...] * inv_n - m2 * m2
            a2 = g2 * jax.lax.rsqrt(var2 + BN_EPS)
            c2 = be2 - m2 * a2
            h2n = h2 * a2 + c2                                # [4, tile]
            # fc3 has a single output feature -> plain VPU mul + XLU reduce.
            z = jnp.sum(h2n * w3t, axis=0, keepdims=True) + b3  # [1, tile]
            o_ref[...] = jax.nn.sigmoid(z).astype(o_ref.dtype)


def network3l_forward(x, params, *, tile_n=512):
    """x: [N, 10] float32 (same layout as the PyTorch module). Returns [N, 1]."""
    n, f_in = x.shape
    assert f_in == 10, f_in

    tile = _round_up(min(tile_n, _round_up(n, 128)), 128)
    n_pad = _round_up(n, tile)
    num_tiles = n_pad // tile

    # Batch on the lane axis: [10, N_pad], zero-padded columns (masked in-kernel).
    xt = jnp.pad(x.astype(jnp.float32).T, ((0, 0), (0, n_pad - n)))

    kernel = functools.partial(_network3l_kernel, n_valid=n, tile_n=tile)

    out = pl.pallas_call(
        kernel,
        out_shape=jax.ShapeDtypeStruct((1, n_pad), jnp.float32),
        grid_spec=pltpu.PrefetchScalarGridSpec(
            num_scalar_prefetch=0,
            grid=(3, num_tiles),                      # (phase, batch tile)
            in_specs=[
                pl.BlockSpec((10, tile), lambda p, j: (0, j)),   # x tile
                pl.BlockSpec((16, 128), lambda p, j: (0, 0)),    # weight slab (resident)
                pl.BlockSpec((8, 128), lambda p, j: (0, 0)),     # vector slab (resident)
            ],
            out_specs=pl.BlockSpec((1, tile), lambda p, j: (0, j)),
            scratch_shapes=[
                pltpu.VMEM((8, 1), jnp.float32),      # layer-1 sum
                pltpu.VMEM((8, 1), jnp.float32),      # layer-1 sum of squares
                pltpu.VMEM((4, 1), jnp.float32),      # layer-2 sum
                pltpu.VMEM((4, 1), jnp.float32),      # layer-2 sum of squares
            ],
        ),
        compiler_params=pltpu.CompilerParams(
            # Both axes sequential: phase ordering and the resident stats
            # accumulators require it.
            dimension_semantics=("arbitrary", "arbitrary"),
        ),
    )(xt, params["wslab"], params["vslab"])

    return out[0, :n].reshape(n, 1)


def _pack_params(w1, b1, g1, be1, w2, b2, g2, be2, w3, b3):
    """Pack the 11 tiny parameter tensors into two (8,128)-aligned slabs."""
    wslab = jnp.zeros((16, 128), jnp.float32)
    wslab = wslab.at[0:8, 0:10].set(w1)        # fc1 weight [8, 10]
    wslab = wslab.at[8:12, 0:8].set(w2)        # fc2 weight [4, 8]
    wslab = wslab.at[12:16, 0:1].set(w3.T)     # fc3 weight as column [4, 1]

    vslab = jnp.zeros((8, 128), jnp.float32)
    vslab = vslab.at[0:8, 0].set(b1)
    vslab = vslab.at[0:8, 1].set(g1)
    vslab = vslab.at[0:8, 2].set(be1)
    vslab = vslab.at[0:4, 3].set(b2)
    vslab = vslab.at[0:4, 4].set(g2)
    vslab = vslab.at[0:4, 5].set(be2)
    vslab = vslab.at[0:1, 6].set(b3)

    return {
        "wslab": wslab, "vslab": vslab,
        # raw copies for the pure-JAX reference
        "w1": w1, "b1": b1, "g1": g1, "be1": be1,
        "w2": w2, "b2": b2, "g2": g2, "be2": be2,
        "w3": w3, "b3": b3,
    }


def init_params(key):
    """PyTorch nn.Linear default init: U[-1/sqrt(fan_in), 1/sqrt(fan_in)].
    Weights stored [out, in] (same as torch). BN: gamma=1, beta=0."""
    keys = jax.random.split(key, 6)

    def linear(kw, kb, fan_in, fan_out):
        bound = 1.0 / float(jnp.sqrt(float(fan_in)))
        w = jax.random.uniform(kw, (fan_out, fan_in), jnp.float32, -bound, bound)
        b = jax.random.uniform(kb, (fan_out,), jnp.float32, -bound, bound)
        return w, b

    w1, b1 = linear(keys[0], keys[1], 10, 8)
    w2, b2 = linear(keys[2], keys[3], 8, 4)
    w3, b3 = linear(keys[4], keys[5], 4, 1)
    g1 = jnp.ones((8,), jnp.float32)
    be1 = jnp.zeros((8,), jnp.float32)
    g2 = jnp.ones((4,), jnp.float32)
    be2 = jnp.zeros((4,), jnp.float32)
    return _pack_params(w1, b1, g1, be1, w2, b2, g2, be2, w3, b3)


def network3l_reference(x, p):
    """Pure-JAX reference (PyTorch semantics, training-mode BatchNorm)."""
    def bn(h, g, b):
        m = jnp.mean(h, axis=0, keepdims=True)
        v = jnp.mean((h - m) ** 2, axis=0, keepdims=True)   # biased variance
        return (h - m) / jnp.sqrt(v + BN_EPS) * g + b

    h = jnp.maximum(x @ p["w1"].T + p["b1"], 0.0)
    h = bn(h, p["g1"], p["be1"])
    h = jnp.maximum(h @ p["w2"].T + p["b2"], 0.0)
    h = bn(h, p["g2"], p["be2"])
    return jax.nn.sigmoid(h @ p["w3"].T + p["b3"])


if __name__ == "__main__":
    key = jax.random.PRNGKey(0)
    k_x, k_p = jax.random.split(key)

    batch = 300          # deliberately not a multiple of 128: exercises padding mask
    x = jax.random.normal(k_x, (batch, 10), dtype=jnp.float32)
    params = init_params(k_p)

    # tile_n=128 -> 3 batch tiles -> exercises the multi-tile global-BN path.
    out = network3l_forward(x, params, tile_n=128)
    out = jax.block_until_ready(out)

    ref = network3l_reference(x, params)
    assert out.shape == (batch, 1), out.shape
    max_err = float(jnp.max(jnp.abs(out - ref)))
    assert jnp.allclose(out, ref, atol=3e-5, rtol=1e-4), max_err

    print("KERNEL_OK")
</pallas_src>

<mosaic_0001>
module attributes {stable_mosaic.version = 11 : i64} {
  func.func @_network3l_kernel(%arg0: i32, %arg1: i32, %arg2: memref<10x128xf32, #tpu.memory_space<vmem>>, %arg3: memref<16x128xf32, #tpu.memory_space<vmem>>, %arg4: memref<8x128xf32, #tpu.memory_space<vmem>>, %arg5: memref<1x128xf32, #tpu.memory_space<vmem>>, %arg6: memref<8x1xf32, #tpu.memory_space<vmem>>, %arg7: memref<8x1xf32, #tpu.memory_space<vmem>>, %arg8: memref<4x1xf32, #tpu.memory_space<vmem>>, %arg9: memref<4x1xf32, #tpu.memory_space<vmem>>) attributes {dimension_semantics = [#tpu.dimension_semantics<arbitrary>, #tpu.dimension_semantics<arbitrary>], iteration_bounds = array<i64: 3, 3>, scalar_prefetch = 0 : i64, scratch_operands = 4 : i64, tpu.core_type = #tpu.core_type<tc>, window_params = [{transform_indices = @transform_0, window_bounds = array<i64: 10, 128>}, {pipeline_mode = #tpu.pipeline_mode<synchronous>, transform_indices = @transform_1, window_bounds = array<i64: 16, 128>}, {pipeline_mode = #tpu.pipeline_mode<synchronous>, transform_indices = @transform_2, window_bounds = array<i64: 8, 128>}, {transform_indices = @transform_3, window_bounds = array<i64: 1, 128>}]} {
    %c0_i32 = arith.constant 0 : i32
    %0 = arith.cmpi eq, %arg0, %c0_i32 : i32
    %c0_i32_0 = arith.constant 0 : i32
    %1 = arith.cmpi eq, %arg1, %c0_i32_0 : i32
    %2 = arith.andi %0, %1 : i1
    %3 = arith.extui %2 : i1 to i32
    %c0_i32_1 = arith.constant 0 : i32
    %4 = arith.cmpi ne, %3, %c0_i32_1 : i32
    scf.if %4 {
      %cst_19 = arith.constant 0.000000e+00 : f32
      %35 = vector.broadcast %cst_19 : f32 to vector<8x1xf32>
      %c0_20 = arith.constant 0 : index
      %c0_21 = arith.constant 0 : index
      %36 = vector.load %arg6[%c0_20, %c0_21] : memref<8x1xf32, #tpu.memory_space<vmem>>, vector<8x1xf32>
      tpu.vector_store %arg6[%c0_20, %c0_21], %35 {strides = array<i32>} : memref<8x1xf32, #tpu.memory_space<vmem>>, vector<8x1xf32>,
      %cst_22 = arith.constant 0.000000e+00 : f32
      %37 = vector.broadcast %cst_22 : f32 to vector<8x1xf32>
      %c0_23 = arith.constant 0 : index
      %c0_24 = arith.constant 0 : index
      %38 = vector.load %arg7[%c0_23, %c0_24] : memref<8x1xf32, #tpu.memory_space<vmem>>, vector<8x1xf32>
      tpu.vector_store %arg7[%c0_23, %c0_24], %37 {strides = array<i32>} : memref<8x1xf32, #tpu.memory_space<vmem>>, vector<8x1xf32>,
      %cst_25 = arith.constant 0.000000e+00 : f32
      %39 = vector.broadcast %cst_25 : f32 to vector<4x1xf32>
      %c0_26 = arith.constant 0 : index
      %c0_27 = arith.constant 0 : index
      %40 = vector.load %arg8[%c0_26, %c0_27] : memref<4x1xf32, #tpu.memory_space<vmem>>, vector<4x1xf32>
      tpu.vector_store %arg8[%c0_26, %c0_27], %39 {strides = array<i32>} : memref<4x1xf32, #tpu.memory_space<vmem>>, vector<4x1xf32>,
      %cst_28 = arith.constant 0.000000e+00 : f32
      %41 = vector.broadcast %cst_28 : f32 to vector<4x1xf32>
      %c0_29 = arith.constant 0 : index
      %c0_30 = arith.constant 0 : index
      %42 = vector.load %arg9[%c0_29, %c0_30] : memref<4x1xf32, #tpu.memory_space<vmem>>, vector<4x1xf32>
      tpu.vector_store %arg9[%c0_29, %c0_30], %41 {strides = array<i32>} : memref<4x1xf32, #tpu.memory_space<vmem>>, vector<4x1xf32>,
    } else {
    }
    %c128_i32 = arith.constant 128 : i32
    %5 = arith.muli %arg1, %c128_i32 : i32
    %6 = tpu.iota {dimensions = array<i32: 1>} : vector<1x128xi32>
    %7 = vector.broadcast %5 : i32 to vector<1x128xi32>
    %8 = arith.addi %7, %6 : vector<1x128xi32>
    %c300_i32 = arith.constant 300 : i32
    %9 = vector.broadcast %c300_i32 : i32 to vector<1x128xi32>
    %10 = arith.cmpi slt, %8, %9 : vector<1x128xi32>
    %11 = arith.extui %10 : vector<1x128xi1> to vector<1x128xi32>
    %12 = arith.sitofp %11 : vector<1x128xi32> to vector<1x128xf32>
    %c0 = arith.constant 0 : index
    %c0_2 = arith.constant 0 : index
    %13 = vector.load %arg3[%c0, %c0_2] : memref<16x128xf32, #tpu.memory_space<vmem>>, vector<8x10xf32>
    %c8 = arith.constant 8 : index
    %c0_3 = arith.constant 0 : index
    %14 = vector.load %arg3[%c8, %c0_3] : memref<16x128xf32, #tpu.memory_space<vmem>>, vector<4x8xf32>
    %c12 = arith.constant 12 : index
    %c0_4 = arith.constant 0 : index
    %15 = vector.load %arg3[%c12, %c0_4] : memref<16x128xf32, #tpu.memory_space<vmem>>, vector<4x1xf32>
    %c0_5 = arith.constant 0 : index
    %c0_6 = arith.constant 0 : index
    %16 = vector.load %arg4[%c0_5, %c0_6] : memref<8x128xf32, #tpu.memory_space<vmem>>, vector<8x1xf32>
    %c0_7 = arith.constant 0 : index
    %c1 = arith.constant 1 : index
    %17 = vector.load %arg4[%c0_7, %c1] : memref<8x128xf32, #tpu.memory_space<vmem>>, vector<8x1xf32>
    %c0_8 = arith.constant 0 : index
    %c2 = arith.constant 2 : index
    %18 = vector.load %arg4[%c0_8, %c2] : memref<8x128xf32, #tpu.memory_space<vmem>>, vector<8x1xf32>
    %c0_9 = arith.constant 0 : index
    %c3 = arith.constant 3 : index
    %19 = vector.load %arg4[%c0_9, %c3] : memref<8x128xf32, #tpu.memory_space<vmem>>, vector<4x1xf32>
    %c0_10 = arith.constant 0 : index
    %c4 = arith.constant 4 : index
    %20 = vector.load %arg4[%c0_10, %c4] : memref<8x128xf32, #tpu.memory_space<vmem>>, vector<4x1xf32>
    %c0_11 = arith.constant 0 : index
    %c5 = arith.constant 5 : index
    %21 = vector.load %arg4[%c0_11, %c5] : memref<8x128xf32, #tpu.memory_space<vmem>>, vector<4x1xf32>
    %c0_12 = arith.constant 0 : index
    %c6 = arith.constant 6 : index
    %22 = vector.load %arg4[%c0_12, %c6] : memref<8x128xf32, #tpu.memory_space<vmem>>, vector<1x1xf32>
    %c0_13 = arith.constant 0 : index
    %c0_14 = arith.constant 0 : index
    %23 = vector.load %arg2[%c0_13, %c0_14] : memref<10x128xf32, #tpu.memory_space<vmem>>, vector<10x128xf32>
    %cst = arith.constant dense<0.000000e+00> : vector<8x128xf32>
    %24 = tpu.matmul %13, %23, %cst {dimension_numbers = #tpu.dot_dimension_numbers<[1], [0], [0], [1], [0, 0, 1, 1], [], []>} : vector<8x10xf32>, vector<10x128xf32>, vector<8x128xf32> -> vector<8x128xf32>
    %25 = vector.broadcast %16 : vector<8x1xf32> to vector<8x128xf32>
    %26 = arith.addf %24, %25 : vector<8x128xf32>
    %cst_15 = arith.constant 0.000000e+00 : f32
    %27 = vector.broadcast %cst_15 : f32 to vector<8x128xf32>
    %28 = arith.maximumf %26, %27 : vector<8x128xf32>
    %c0_i32_16 = arith.constant 0 : i32
    %29 = arith.cmpi eq, %arg0, %c0_i32_16 : i32
    %30 = arith.extui %29 : i1 to i32
    %c0_i32_17 = arith.constant 0 : i32
    %31 = arith.cmpi ne, %30, %c0_i32_17 : i32
    scf.if %31 {
      %35 = vector.broadcast %12 : vector<1x128xf32> to vector<8x128xf32>
      %36 = arith.mulf %28, %35 : vector<8x128xf32>
      %c0_19 = arith.constant 0 : index
      %c0_20 = arith.constant 0 : index
      %37 = vector.load %arg6[%c0_19, %c0_20] : memref<8x1xf32, #tpu.memory_space<vmem>>, vector<8x1xf32>
      %cst_21 = arith.constant dense<0.000000e+00> : vector<8xf32>
      %38 = vector.multi_reduction <add>, %36, %cst_21 [1] : vector<8x128xf32> to vector<8xf32>
      %39 = vector.shape_cast %38 : vector<8xf32> to vector<8x1xf32>
      %40 = arith.addf %37, %39 : vector<8x1xf32>
      %c0_22 = arith.constant 0 : index
      %c0_23 = arith.constant 0 : index
      %41 = vector.load %arg6[%c0_22, %c0_23] : memref<8x1xf32, #tpu.memory_space<vmem>>, vector<8x1xf32>
      tpu.vector_store %arg6[%c0_22, %c0_23], %40 {strides = array<i32>} : memref<8x1xf32, #tpu.memory_space<vmem>>, vector<8x1xf32>,
      %c0_24 = arith.constant 0 : index
      %c0_25 = arith.constant 0 : index
      %42 = vector.load %arg7[%c0_24, %c0_25] : memref<8x1xf32, #tpu.memory_space<vmem>>, vector<8x1xf32>
      %43 = arith.mulf %36, %36 : vector<8x128xf32>
      %cst_26 = arith.constant dense<0.000000e+00> : vector<8xf32>
      %44 = vector.multi_reduction <add>, %43, %cst_26 [1] : vector<8x128xf32> to vector<8xf32>
      %45 = vector.shape_cast %44 : vector<8xf32> to vector<8x1xf32>
      %46 = arith.addf %42, %45 : vector<8x1xf32>
      %c0_27 = arith.constant 0 : index
      %c0_28 = arith.constant 0 : index
      %47 = vector.load %arg7[%c0_27, %c0_28] : memref<8x1xf32, #tpu.memory_space<vmem>>, vector<8x1xf32>
      tpu.vector_store %arg7[%c0_27, %c0_28], %46 {strides = array<i32>} : memref<8x1xf32, #tpu.memory_space<vmem>>, vector<8x1xf32>,
    } else {
    }
    %c1_i32 = arith.constant 1 : i32
    %32 = arith.cmpi sge, %arg0, %c1_i32 : i32
    %33 = arith.extui %32 : i1 to i32
    %c0_i32_18 = arith.constant 0 : i32
    %34 = arith.cmpi ne, %33, %c0_i32_18 : i32
    scf.if %34 {
      %c0_19 = arith.constant 0 : index
      %c0_20 = arith.constant 0 : index
      %35 = vector.load %arg6[%c0_19, %c0_20] : memref<8x1xf32, #tpu.memory_space<vmem>>, vector<8x1xf32>
      %cst_21 = arith.constant 0.00333333341 : f32
      %36 = vector.broadcast %cst_21 : f32 to vector<8x1xf32>
      %37 = arith.mulf %35, %36 : vector<8x1xf32>
      %c0_22 = arith.constant 0 : index
      %c0_23 = arith.constant 0 : index
      %38 = vector.load %arg7[%c0_22, %c0_23] : memref<8x1xf32, #tpu.memory_space<vmem>>, vector<8x1xf32>
      %cst_24 = arith.constant 0.00333333341 : f32
      %39 = vector.broadcast %cst_24 : f32 to vector<8x1xf32>
      %40 = arith.mulf %38, %39 : vector<8x1xf32>
      %41 = arith.mulf %37, %37 : vector<8x1xf32>
      %42 = arith.subf %40, %41 : vector<8x1xf32>
      %cst_25 = arith.constant 9.99999974E-6 : f32
      %43 = vector.broadcast %cst_25 : f32 to vector<8x1xf32>
      %44 = arith.addf %42, %43 : vector<8x1xf32>
      %45 = math.rsqrt %44 : vector<8x1xf32>
      %46 = arith.mulf %17, %45 : vector<8x1xf32>
      %47 = arith.mulf %37, %46 : vector<8x1xf32>
      %48 = arith.subf %18, %47 : vector<8x1xf32>
      %49 = vector.broadcast %46 : vector<8x1xf32> to vector<8x128xf32>
      %50 = arith.mulf %28, %49 : vector<8x128xf32>
      %51 = vector.broadcast %48 : vector<8x1xf32> to vector<8x128xf32>
      %52 = arith.addf %50, %51 : vector<8x128xf32>
      %cst_26 = arith.constant dense<0.000000e+00> : vector<4x128xf32>
      %53 = tpu.matmul %14, %52, %cst_26 {dimension_numbers = #tpu.dot_dimension_numbers<[1], [0], [0], [1], [0, 0, 1, 1], [], []>} : vector<4x8xf32>, vector<8x128xf32>, vector<4x128xf32> -> vector<4x128xf32>
      %54 = vector.broadcast %19 : vector<4x1xf32> to vector<4x128xf32>
      %55 = arith.addf %53, %54 : vector<4x128xf32>
      %cst_27 = arith.constant 0.000000e+00 : f32
      %56 = vector.broadcast %cst_27 : f32 to vector<4x128xf32>
      %57 = arith.maximumf %55, %56 : vector<4x128xf32>
      %c1_i32_28 = arith.constant 1 : i32
      %58 = arith.cmpi eq, %arg0, %c1_i32_28 : i32
      %59 = arith.extui %58 : i1 to i32
      %c0_i32_29 = arith.constant 0 : i32
      %60 = arith.cmpi ne, %59, %c0_i32_29 : i32
      scf.if %60 {
        %64 = vector.broadcast %12 : vector<1x128xf32> to vector<4x128xf32>
        %65 = arith.mulf %57, %64 : vector<4x128xf32>
        %c0_31 = arith.constant 0 : index
        %c0_32 = arith.constant 0 : index
        %66 = vector.load %arg8[%c0_31, %c0_32] : memref<4x1xf32, #tpu.memory_space<vmem>>, vector<4x1xf32>
        %cst_33 = arith.constant dense<0.000000e+00> : vector<4xf32>
        %67 = vector.multi_reduction <add>, %65, %cst_33 [1] : vector<4x128xf32> to vector<4xf32>
        %68 = vector.shape_cast %67 : vector<4xf32> to vector<4x1xf32>
        %69 = arith.addf %66, %68 : vector<4x1xf32>
        %c0_34 = arith.constant 0 : index
        %c0_35 = arith.constant 0 : index
        %70 = vector.load %arg8[%c0_34, %c0_35] : memref<4x1xf32, #tpu.memory_space<vmem>>, vector<4x1xf32>
        tpu.vector_store %arg8[%c0_34, %c0_35], %69 {strides = array<i32>} : memref<4x1xf32, #tpu.memory_space<vmem>>, vector<4x1xf32>,
        %c0_36 = arith.constant 0 : index
        %c0_37 = arith.constant 0 : index
        %71 = vector.load %arg9[%c0_36, %c0_37] : memref<4x1xf32, #tpu.memory_space<vmem>>, vector<4x1xf32>
        %72 = arith.mulf %65, %65 : vector<4x128xf32>
        %cst_38 = arith.constant dense<0.000000e+00> : vector<4xf32>
        %73 = vector.multi_reduction <add>, %72, %cst_38 [1] : vector<4x128xf32> to vector<4xf32>
        %74 = vector.shape_cast %73 : vector<4xf32> to vector<4x1xf32>
        %75 = arith.addf %71, %74 : vector<4x1xf32>
        %c0_39 = arith.constant 0 : index
        %c0_40 = arith.constant 0 : index
        %76 = vector.load %arg9[%c0_39, %c0_40] : memref<4x1xf32, #tpu.memory_space<vmem>>, vector<4x1xf32>
        tpu.vector_store %arg9[%c0_39, %c0_40], %75 {strides = array<i32>} : memref<4x1xf32, #tpu.memory_space<vmem>>, vector<4x1xf32>,
      } else {
      }
      %c2_i32 = arith.constant 2 : i32
      %61 = arith.cmpi eq, %arg0, %c2_i32 : i32
      %62 = arith.extui %61 : i1 to i32
      %c0_i32_30 = arith.constant 0 : i32
      %63 = arith.cmpi ne, %62, %c0_i32_30 : i32
      scf.if %63 {
        %c0_31 = arith.constant 0 : index
        %c0_32 = arith.constant 0 : index
        %64 = vector.load %arg8[%c0_31, %c0_32] : memref<4x1xf32, #tpu.memory_space<vmem>>, vector<4x1xf32>
        %cst_33 = arith.constant 0.00333333341 : f32
        %65 = vector.broadcast %cst_33 : f32 to vector<4x1xf32>
        %66 = arith.mulf %64, %65 : vector<4x1xf32>
        %c0_34 = arith.constant 0 : index
        %c0_35 = arith.constant 0 : index
        %67 = vector.load %arg9[%c0_34, %c0_35] : memref<4x1xf32, #tpu.memory_space<vmem>>, vector<4x1xf32>
        %cst_36 = arith.constant 0.00333333341 : f32
        %68 = vector.broadcast %cst_36 : f32 to vector<4x1xf32>
        %69 = arith.mulf %67, %68 : vector<4x1xf32>
        %70 = arith.mulf %66, %66 : vector<4x1xf32>
        %71 = arith.subf %69, %70 : vector<4x1xf32>
        %cst_37 = arith.constant 9.99999974E-6 : f32
        %72 = vector.broadcast %cst_37 : f32 to vector<4x1xf32>
        %73 = arith.addf %71, %72 : vector<4x1xf32>
        %74 = math.rsqrt %73 : vector<4x1xf32>
        %75 = arith.mulf %20, %74 : vector<4x1xf32>
        %76 = arith.mulf %66, %75 : vector<4x1xf32>
        %77 = arith.subf %21, %76 : vector<4x1xf32>
        %78 = vector.broadcast %75 : vector<4x1xf32> to vector<4x128xf32>
        %79 = arith.mulf %57, %78 : vector<4x128xf32>
        %80 = vector.broadcast %77 : vector<4x1xf32> to vector<4x128xf32>
        %81 = arith.addf %79, %80 : vector<4x128xf32>
        %82 = vector.broadcast %15 : vector<4x1xf32> to vector<4x128xf32>
        %83 = arith.mulf %81, %82 : vector<4x128xf32>
        %cst_38 = arith.constant dense<0.000000e+00> : vector<128xf32>
        %84 = vector.multi_reduction <add>, %83, %cst_38 [0] : vector<4x128xf32> to vector<128xf32>
        %85 = vector.shape_cast %84 : vector<128xf32> to vector<1x128xf32>
        %86 = vector.broadcast %22 : vector<1x1xf32> to vector<1x128xf32>
        %87 = arith.addf %85, %86 : vector<1x128xf32>
        %88 = arith.negf %87 : vector<1x128xf32>
        %89 = math.exp %88 : vector<1x128xf32>
        %cst_39 = arith.constant 1.000000e+00 : f32
        %90 = vector.broadcast %cst_39 : f32 to vector<1x128xf32>
        %91 = arith.addf %90, %89 : vector<1x128xf32>
        %92 = arith.divf %90, %91 : vector<1x128xf32>
        %c0_40 = arith.constant 0 : index
        %c0_41 = arith.constant 0 : index
        %93 = vector.load %arg5[%c0_40, %c0_41] : memref<1x128xf32, #tpu.memory_space<vmem>>, vector<1x128xf32>
        tpu.vector_store %arg5[%c0_40, %c0_41], %92 {strides = array<i32>} : memref<1x128xf32, #tpu.memory_space<vmem>>, vector<1x128xf32>,
      } else {
      }
    } else {
    }
    return
  }
  func.func @transform_0(%arg0: i32, %arg1: i32) -> (i32, i32) {
    %c0_i32 = arith.constant 0 : i32
    %c0_i32_0 = arith.constant 0 : i32
    return %c0_i32, %arg1 : i32, i32
  }
  func.func @transform_1(%arg0: i32, %arg1: i32) -> (i32, i32) {
    %c0_i32 = arith.constant 0 : i32
    %c0_i32_0 = arith.constant 0 : i32
    %c0_i32_1 = arith.constant 0 : i32
    return %c0_i32, %c0_i32_0 : i32, i32
  }
  func.func @transform_2(%arg0: i32, %arg1: i32) -> (i32, i32) {
    %c0_i32 = arith.constant 0 : i32
    %c0_i32_0 = arith.constant 0 : i32
    %c0_i32_1 = arith.constant 0 : i32
    return %c0_i32, %c0_i32_0 : i32, i32
  }
  func.func @transform_3(%arg0: i32, %arg1: i32) -> (i32, i32) {
    %c0_i32 = arith.constant 0 : i32
    %c0_i32_0 = arith.constant 0 : i32
    return %c0_i32, %arg1 : i32, i32
  }
}

</mosaic_0001>

<llo_original>
// kernel: tpu_custom_call.1
$region0: #{tpu_custom_call.1}
  #allocation0 [shape = 'u32[]', space=smem, size = 0x4, offset = 0x4, fixed_abs, tag = 'smem constant byte address 0x4 - core index']
  #allocation1 [shape = 'u32[144,128]{1,0:T(1,128)}', space=vmem, size = 0x12000, scoped, tag = 'internal scratch']
  #allocation2 [shape = 'f32[8,1]{1,0:T(8,128)}', space=vmem, size = 0x1000, scoped, tag = 'scratch operand']
  #allocation3 [shape = 'f32[8,1]{1,0:T(8,128)}', space=vmem, size = 0x1000, scoped, tag = 'scratch operand']
  #allocation4 [shape = 'f32[4,1]{1,0:T(4,128)}', space=vmem, size = 0x800, scoped, tag = 'scratch operand']
  #allocation5 [shape = 'f32[4,1]{1,0:T(4,128)}', space=vmem, size = 0x800, scoped, tag = 'scratch operand']
  %s0 = inlined_call_operand.hbm [shape: f32[10,384], index: 0, kind: input, shape index: {}]
  %s1 = inlined_call_operand.hbm [shape: f32[16,128], index: 1, kind: input, shape index: {}]
  %s2 = inlined_call_operand.hbm [shape: f32[8,128], index: 2, kind: input, shape index: {}]
  %s3 = inlined_call_operand.hbm [shape: f32[1,384], index: 3, kind: output, shape index: {}]
  %s4 = sld [smem:[#allocation0]]
  $region77: #{tpu_custom_call.1} parent=0
    _
  %s6 = ssub.s32 1, %s4
  %s7 = scalar_select 0, %s6, %s4
  $region1: #{tpu_custom_call.1} parent=0
    #allocation6 [shape = 'u8[16384]{0}', space=vmem, size = 0x4000, scoped, tag = 'input window, operand 0']
    #allocation7 [shape = 's32[2]{0}', space=sflag, size = 0x8, scoped, tag = 'scoped memory for tpu_custom_call.1']
    #allocation8 [shape = 's32[2]{0}', space=sflag, size = 0x8, scoped, tag = 'scoped memory for tpu_custom_call.1']
    #allocation9 [shape = 'u8[8192]{0}', space=vmem, size = 0x2000, scoped, tag = 'input window, operand 1, single buffered']
    #allocation10 [shape = 's32[1]{0}', space=sflag, size = 0x4, scoped, tag = 'scoped memory for tpu_custom_call.1']
    #allocation11 [shape = 'u8[4096]{0}', space=vmem, size = 0x1000, scoped, tag = 'input window, operand 2, single buffered']
    #allocation12 [shape = 'u8[1024]{0}', space=vmem, size = 0x400, scoped, tag = 'output window, operand 0']
    %8 = vsyncpa [#allocation7], 0
    %s9 = scalar_lea.sflag [#allocation7], 1
    %10 = vsyncpa %s9, 0
    %11 = vsyncpa [#allocation10], 0
    %12 = vsyncpa [#allocation8], 0
    %s13 = scalar_lea.sflag [#allocation8], 1
    %14 = vsyncpa %s13, 0
    loop: start=0, step=1, limit=11
    $region2: #{tpu_custom_call.1} parent=1 // loop_pre_header
      _
    $region3: #{tpu_custom_call.1} parent=1 // loop_header
      %s16 = sphi 0, %s20
      %p17 = scmp.ge.s32.totalorder %s16, 11
      %s23 = sphi 0, %s35
      %s24 = sphi 0, %s31
      %s25 = sphi 0, %s23
      %s26 = sphi 0, %s24
      %s27 = sphi 0, %s25
      %s28 = sphi 0, %s26
      %s38 = sphi 0, %s40
      %s41 = sphi 0, %s38
      %s42 = sphi 0, %s41
      %s58 = sphi 0, %s42
      %s62 = sphi 0, %s62
      %s64 = sphi 0, %s62
      %s65 = sphi 0, %s64
      %s79 = sphi 0, %s65
      %s83 = sphi 0, %s83
      %s85 = sphi 0, %s83
      %s86 = sphi 0, %s85
      %s100 = sphi 0, %s86
      %s106 = sphi 0, %s108
      %s109 = sphi 0, %s106
      %s110 = sphi 0, %s109
      %s126 = sphi 0, %s110
    $region4: #{tpu_custom_call.1} parent=1 // loop_header_branch
      %19 = sbr.rel (%p17) target = $region8
    $region5: #{tpu_custom_call.1} parent=1 // loop_body
      %s21 = ssub.s32 %s16, 1
      %s22 = ssub.s32 %s16, 2
      %s29 = sadd.s32 1, %s24
      %p30 = scmp.ge.s32.totalorder %s29, 3
      %s31 = scalar_select %p30, 0, %s29
      %s32 = sadd.s32 1, %s23
      %s33 = scalar_select %p30, %s32, %s23
      %p34 = scmp.ge.s32.totalorder %s33, 3
      %s35 = scalar_select %p34, 0, %s33
      %s36 = ssub.s32 %s24, %s31
      %p37 = scmp.eq.s32.totalorder %s36, 0
      %s39 = sadd.s32 %s38, 1
      %s40 = scalar_select %p37, %s38, %s39
      %p43 = pneg %p37
      %p44 = scmp.eq.s32.totalorder %s16, 8
      %p45 = por %p43, %p44
      %p46 = scmp.ne.s32.totalorder %s38, %s41
      %p47 = scmp.eq.s32.totalorder %s16, 0
      %p48 = por %p46, %p47
      %p49 = scmp.ne.s32.totalorder %s38, %s41
      %p50 = scmp.eq.s32.totalorder %s21, 8
      %p51 = por %p49, %p50
      %p52 = scmp.ne.s32.totalorder %s41, %s42
      %p53 = scmp.eq.s32.totalorder %s21, 0
      %p54 = por %p52, %p53
      %p55 = scmp.ne.s32.totalorder %s41, %s42
      %p56 = scmp.eq.s32.totalorder %s22, 8
      %p57 = por %p55, %p56
      %p59 = scmp.ne.s32.totalorder %s42, %s58
      %p60 = scmp.eq.s32.totalorder %s22, 0
      %p61 = por %p59, %p60
      %s63 = sadd.s32 %s62, 1
      %p66 = scmp.eq.s32.totalorder %s16, 8
      %p67 = scmp.ne.s32.totalorder %s62, %s64
      %p68 = scmp.eq.s32.totalorder %s16, 0
      %p69 = por %p67, %p68
      %p70 = scmp.ne.s32.totalorder %s62, %s64
      %p71 = scmp.eq.s32.totalorder %s21, 8
      %p72 = por %p70, %p71
      %p73 = scmp.ne.s32.totalorder %s64, %s65
      %p74 = scmp.eq.s32.totalorder %s21, 0
      %p75 = por %p73, %p74
      %p76 = scmp.ne.s32.totalorder %s64, %s65
      %p77 = scmp.eq.s32.totalorder %s22, 8
      %p78 = por %p76, %p77
      %p80 = scmp.ne.s32.totalorder %s65, %s79
      %p81 = scmp.eq.s32.totalorder %s22, 0
      %p82 = por %p80, %p81
      %s84 = sadd.s32 %s83, 1
      %p87 = scmp.eq.s32.totalorder %s16, 8
      %p88 = scmp.ne.s32.totalorder %s83, %s85
      %p89 = scmp.eq.s32.totalorder %s16, 0
      %p90 = por %p88, %p89
      %p91 = scmp.ne.s32.totalorder %s83, %s85
      %p92 = scmp.eq.s32.totalorder %s21, 8
      %p93 = por %p91, %p92
      %p94 = scmp.ne.s32.totalorder %s85, %s86
      %p95 = scmp.eq.s32.totalorder %s21, 0
      %p96 = por %p94, %p95
      %p97 = scmp.ne.s32.totalorder %s85, %s86
      %p98 = scmp.eq.s32.totalorder %s22, 8
      %p99 = por %p97, %p98
      %p101 = scmp.ne.s32.totalorder %s86, %s100
      %p102 = scmp.eq.s32.totalorder %s22, 0
      %p103 = por %p101, %p102
      %s104 = ssub.s32 %s24, %s31
      %p105 = scmp.eq.s32.totalorder %s104, 0
      %s107 = sadd.s32 %s106, 1
      %s108 = scalar_select %p105, %s106, %s107
      %p111 = pneg %p105
      %p112 = scmp.eq.s32.totalorder %s16, 8
      %p113 = por %p111, %p112
      %p114 = scmp.ne.s32.totalorder %s106, %s109
      %p115 = scmp.eq.s32.totalorder %s16, 0
      %p116 = por %p114, %p115
      %p117 = scmp.ne.s32.totalorder %s106, %s109
      %p118 = scmp.eq.s32.totalorder %s21, 8
      %p119 = por %p117, %p118
      %p120 = scmp.ne.s32.totalorder %s109, %s110
      %p121 = scmp.eq.s32.totalorder %s21, 0
      %p122 = por %p120, %p121
      %p123 = scmp.ne.s32.totalorder %s109, %s110
      %p124 = scmp.eq.s32.totalorder %s22, 8
      %p125 = por %p123, %p124
      %p127 = scmp.ne.s32.totalorder %s110, %s126
      %p128 = scmp.eq.s32.totalorder %s22, 0
      %p129 = por %p127, %p128
      %p130 = scmp.le.s32.totalorder 1, %s16
      %p131 = scmp.lt.s32.totalorder %s16, 10
      %p132 = pnand %p130, %p131
      %p133 = pneg %p132
      // Predicated region
      $region9: #{tpu_custom_call.1} parent=5 // pred_check
        _
      $region10: #{tpu_custom_call.1} parent=5 // pred_check_branch
        %135 = sbr.rel (%p132) target = $region12
      $region11: #{tpu_custom_call.1} parent=5 // pred_region
        %s136 = ssub.s32 %s16, 1
        // Predicated region
        $region13: #{tpu_custom_call.1} parent=11 // pred_check
          %p137 = pneg %p75
        $region14: #{tpu_custom_call.1} parent=11 // pred_check_branch
          %139 = sbr.rel (%p137) target = $region16
        $region15: #{tpu_custom_call.1} parent=11 // pred_region
          %s141 = ssub.s32 256, 256
          %142 = vsyncadd [#allocation10], %s141
          %s143 = sshll.u32 [#allocation9], 4
          %s144 = int_to_ptr.vmem [resolvable:$true] %s143
          %149 = dma.hbm_to_vmem [thread:$0]  %s1, 256, %s144, [#allocation10], 128, 128, 8
        $region16: #{tpu_custom_call.1} parent=11 // pred_fallthru
          _
        // Predicated region
        $region17: #{tpu_custom_call.1} parent=11 // pred_check
          %p150 = pneg %p96
        $region18: #{tpu_custom_call.1} parent=11 // pred_check_branch
          %152 = sbr.rel (%p150) target = $region20
        $region19: #{tpu_custom_call.1} parent=11 // pred_region
          %s154 = ssub.s32 128, 128
          %155 = vsyncadd [#allocation10], %s154
          %s157 = sshll.u32 [#allocation11], 4
          %s158 = int_to_ptr.vmem [resolvable:$true] %s157
          %160 = dma.hbm_to_vmem [thread:$0]  %s2, 128, %s158, [#allocation10]
        $region20: #{tpu_custom_call.1} parent=11 // pred_fallthru
          _
      $region12: #{tpu_custom_call.1} parent=5 // pred_fallthru
        _
      %p161 = scmp.lt.s32.totalorder %s16, 9
      // Predicated region
      $region21: #{tpu_custom_call.1} parent=5 // pred_check
        %p162 = pneg %p161
      $region22: #{tpu_custom_call.1} parent=5 // pred_check_branch
        %164 = sbr.rel (%p162) target = $region24
      $region23: #{tpu_custom_call.1} parent=5 // pred_region
        // Predicated region
        $region25: #{tpu_custom_call.1} parent=23 // pred_check
          %p165 = pneg %p48
        $region26: #{tpu_custom_call.1} parent=23 // pred_check_branch
          %167 = sbr.rel (%p165) target = $region28
        $region27: #{tpu_custom_call.1} parent=23 // pred_region
          %s168 = sand.u32 %s38, 1
          %s169 = scalar_lea.sflag [#allocation7], %s168
          %s170 = sand.u32 %s38, 1
          %s171 = smul.addr %s170, 16
          %s172 = scalar_lea.vmem [#allocation6], %s171
          %s174 = ssub.s32 256, 256
          %175 = vsyncadd %s169, %s174
          %s176 = smul.addr %s24, 128
          %s177 = scalar_lea.hbm %s0, %s176
          %s178 = sshll.u32 %s172, 4
          %s179 = int_to_ptr.vmem [resolvable:$true] %s178
          %184 = dma.hbm_to_vmem [thread:$0]  %s177, 256, %s179, %s169, 384, 128, 8
        $region28: #{tpu_custom_call.1} parent=23 // pred_fallthru
          _
      $region24: #{tpu_custom_call.1} parent=5 // pred_fallthru
        _
      %p185 = scmp.le.s32.totalorder 1, %s16
      %p186 = scmp.lt.s32.totalorder %s16, 10
      %p187 = pnand %p185, %p186
      %p188 = pneg %p187
      // Predicated region
      $region29: #{tpu_custom_call.1} parent=5 // pred_check
        _
      $region30: #{tpu_custom_call.1} parent=5 // pred_check_branch
        %190 = sbr.rel (%p187) target = $region32
      $region31: #{tpu_custom_call.1} parent=5 // pred_region
        %s191 = ssub.s32 %s16, 1
        %s192 = sand.u32 %s41, 1
        %s193 = scalar_lea.sflag [#allocation7], %s192
        %s194 = sand.u32 %s41, 1
        %s195 = smul.addr %s194, 16
        %s196 = scalar_lea.vmem [#allocation6], %s195
        // Predicated region
        $region33: #{tpu_custom_call.1} parent=31 // pred_check
          %p197 = pneg %p54
        $region34: #{tpu_custom_call.1} parent=31 // pred_check_branch
          %199 = sbr.rel (%p197) target = $region36
        $region35: #{tpu_custom_call.1} parent=31 // pred_region
          %200 = dma.done %s193, 256
        $region36: #{tpu_custom_call.1} parent=31 // pred_fallthru
          _
        // Predicated region
        $region37: #{tpu_custom_call.1} parent=31 // pred_check
          %p201 = pneg %p75
        $region38: #{tpu_custom_call.1} parent=31 // pred_check_branch
          %203 = sbr.rel (%p201) target = $region40
        $region39: #{tpu_custom_call.1} parent=31 // pred_region
          %204 = dma.done [#allocation10], 256
        $region40: #{tpu_custom_call.1} parent=31 // pred_fallthru
          _
        // Predicated region
        $region41: #{tpu_custom_call.1} parent=31 // pred_check
          %p205 = pneg %p96
        $region42: #{tpu_custom_call.1} parent=31 // pred_check_branch
          %207 = sbr.rel (%p205) target = $region44
        $region43: #{tpu_custom_call.1} parent=31 // pred_region
          %208 = dma.done [#allocation10], 128
        $region44: #{tpu_custom_call.1} parent=31 // pred_fallthru
          _
        %s209 = sand.u32 %s41, 1
        %s210 = scalar_lea.sflag [#allocation7], %s209
        %s211 = sand.u32 %s41, 1
        %s212 = smul.addr %s211, 16
        %s213 = scalar_lea.vmem [#allocation6], %s212
        %p214 = pneg %p54
        %p215 = pneg %p51
        %p216 = pneg %p75
        %p217 = pneg %p72
        %p218 = pneg %p96
        %p219 = pneg %p93
        %p220 = pneg %p122
        %p221 = pneg %p119
        %s222 = sand.u32 %s109, 1
        %s223 = scalar_lea.sflag [#allocation8], %s222
        %s224 = sand.u32 %s109, 1
        %s225 = scalar_lea.vmem [#allocation12], %s224
        %p226 = scmp.eq.s32.totalorder %s25, 0
        %p227 = scmp.eq.s32.totalorder %s26, 0
        %p228 = pnand %p226, %p227
        %p229 = pneg %p228
        // Predicated region
        $region45: #{tpu_custom_call.1} parent=31 // pred_check
          _
        $region46: #{tpu_custom_call.1} parent=31 // pred_check_branch
          %231 = sbr.rel (%p228) target = $region48
        $region47: #{tpu_custom_call.1} parent=31 // pred_region
          %vm232 = vcmask 7168
          %233 = vst.msk [vmem:[#allocation2] sm:$0xff] %vm232, 0.0
          %234 = vst.msk [vmem:[#allocation3] sm:$0xff] %vm232, 0.0
          %vm235 = vcmask 3072
          %236 = vst.msk [vmem:[#allocation4] sm:$0xf] %vm235, 0.0
          %237 = vst.msk [vmem:[#allocation5] sm:$0xf] %vm235, 0.0
        $region48: #{tpu_custom_call.1} parent=31 // pred_fallthru
          _
        %s238 = smul.u32 %s26, 128
        %v239 = vlaneseq
        %v240 = vand.u32 %v239, 127
        %v241 = vstv %s238
        %v242 = vadd.s32 %v241, %v240
        %vm243 = vcmp.lt.s32.totalorder %v242, 300
        %v244 = vsel %vm243, 1, 0
        %v245 = vcvt.s32.f32 %v244
        %v246 = vld [vmem:[#allocation9] sm:$0xff]
        %v247 = vld [vmem:[#allocation9 + $0x8] sm:$0xf]
        %v248 = vld [vmem:[#allocation9 + $0xc] sm:$0xf]
        %v249 = vld [vmem:[#allocation11] sm:$0xff]
        %v250 = vld [vmem:[#allocation11] sm:$0xf]
        %v251 = vld [vmem:[#allocation11] sm:$0x1]
        %v252 = vld [vmem:[%s196] sm:$0xff]
        %v253 = vld [vmem:[%s196 + $0x8] sm:$0x3]
        %255 = vset.pattern.permute.xlu0 0
        %256 = vperm.xlu0 %255, %v249
        %v257 = vpop.permute.xlu0 %256
        %vm259 = vcmask 80896
        %v261 = vsel %vm259, %v246, 0
        %vm263 = vcmask 1041408
        %v265 = vsel %vm263, %v253, 0
        %267 = vmatprep.subr.mxu0 0.0
        %268 = vmatpush1.msra.mxu0 0.0
        %269 = vmatprep.subr.mxu0 0.0
        %270 = vmatpush1.msra.mxu0 0.0
        %271 = vmatprep.subr.mxu0 0.0
        %272 = vmatpush1.msra.mxu0 0.0
        %273 = vmatprep.subr.mxu0 0.0
        %274 = vmatpush1.msra.mxu0 0.0
        %275 = vmatprep.subr.mxu0 0.0
        %276 = vmatpush1.msra.mxu0 0.0
        %277 = vmatprep.subr.mxu0 0.0
        %278 = vmatpush1.msra.mxu0 0.0
        %279 = vmatprep.subr.mxu0 0.0
        %280 = vmatpush1.msra.mxu0 0.0
        %281 = vmatprep.subr.mxu0 0.0
        %282 = vmatpush1.msra.mxu0 0.0
        %283 = vmatprep.subr.mxu0 0.0
        %284 = vmatpush1.msra.mxu0 0.0
        %285 = vmatprep.subr.mxu0 0.0
        %286 = vmatpush1.msra.mxu0 0.0
        %287 = vmatprep.subr.mxu0 0.0
        %288 = vmatpush1.msra.mxu0 0.0
        %289 = vmatprep.subr.mxu0 0.0
        %290 = vmatpush1.msra.mxu0 0.0
        %291 = vmatprep.subr.mxu0 0.0
        %292 = vmatpush1.msra.mxu0 0.0
        %293 = vmatprep.subr.mxu0 0.0
        %294 = vmatpush1.msra.mxu0 0.0
        %295 = vmatprep.subr.mxu0 0.0
        %296 = vmatpush1.msra.mxu0 %v265
        %297 = vmatprep.subr.mxu0 0.0
        %298 = vmatpush1.msra.mxu0 %v252
        %299 = vmatprep.subr.mxu0 0.0
        %300 = vmatpush2.msra.mxu0 0.0
        %301 = vmatprep.subr.mxu0 0.0
        %302 = vmatpush2.msra.mxu0 0.0
        %303 = vmatprep.subr.mxu0 0.0
        %304 = vmatpush2.msra.mxu0 0.0
        %305 = vmatprep.subr.mxu0 0.0
        %306 = vmatpush2.msra.mxu0 0.0
        %307 = vmatprep.subr.mxu0 0.0
        %308 = vmatpush2.msra.mxu0 0.0
        %309 = vmatprep.subr.mxu0 0.0
        %310 = vmatpush2.msra.mxu0 0.0
        %311 = vmatprep.subr.mxu0 0.0
        %312 = vmatpush2.msra.mxu0 0.0
        %313 = vmatprep.subr.mxu0 0.0
        %314 = vmatpush2.msra.mxu0 0.0
        %315 = vmatprep.subr.mxu0 0.0
        %316 = vmatpush2.msra.mxu0 0.0
        %317 = vmatprep.subr.mxu0 0.0
        %318 = vmatpush2.msra.mxu0 0.0
        %319 = vmatprep.subr.mxu0 0.0
        %320 = vmatpush2.msra.mxu0 0.0
        %321 = vmatprep.subr.mxu0 0.0
        %322 = vmatpush2.msra.mxu0 0.0
        %323 = vmatprep.subr.mxu0 0.0
        %324 = vmatpush2.msra.mxu0 0.0
        %325 = vmatprep.subr.mxu0 0.0
        %326 = vmatpush2.msra.mxu0 0.0
        %327 = vmatprep.subr.mxu0 0.0
        %328 = vmatpush2.msra.mxu0 0.0
        %329 = vmatprep.subr.mxu0 0.0
        %330 = vmatpush2.msra.mxu0 0.0
        %331 = vmatprep.mubr.f32.mxu0 0.0
        %332 = vmatmul.mubr.f32.gmra.mxu0 %v261
        %v333 = vpop.f32.mrf.mxu0
        %v334 = vadd.f32 %v257, %v333
        %v335 = vpop.f32.mrf.mxu0
        %336 = vdwg.mxu0
        %v337 = vmax.f32 %v334, 0.0
        // Predicated region
        $region49: #{tpu_custom_call.1} parent=31 // pred_check
          %p338 = pneg %p226
        $region50: #{tpu_custom_call.1} parent=31 // pred_check_branch
          %340 = sbr.rel (%p338) target = $region52
        $region51: #{tpu_custom_call.1} parent=31 // pred_region
          %v341 = vmul.f32 %v337, %v245
          %v342 = vld [vmem:[#allocation2] sm:$0xff]
          %343 = vadd.xlane.f32.xlu0 %v341
          %v344 = vpop.xlane.xlu0 %343
          %v345 = vadd.f32 %v342, %v344
          %vm346 = vcmask 7168
          %347 = vst.msk [vmem:[#allocation2] sm:$0xff] %vm346, %v345
          %v348 = vld [vmem:[#allocation3] sm:$0xff]
          %v349 = vmul.f32 %v341, %v341
          %350 = vadd.xlane.f32.xlu0 %v349
          %v351 = vpop.xlane.xlu0 %350
          %v352 = vadd.f32 %v348, %v351
          %353 = vst.msk [vmem:[#allocation3] sm:$0xff] %vm346, %v352
        $region52: #{tpu_custom_call.1} parent=31 // pred_fallthru
          _
        %p354 = scmp.ge.s32.totalorder %s25, 1
        // Predicated region
        $region53: #{tpu_custom_call.1} parent=31 // pred_check
          %p355 = pneg %p354
        $region54: #{tpu_custom_call.1} parent=31 // pred_check_branch
          %357 = sbr.rel (%p355) target = $region56
        $region55: #{tpu_custom_call.1} parent=31 // pred_region
          %v358 = vld [vmem:[#allocation2] sm:$0xff]
          %v359 = vmul.f32 %v358, 0.0033333334
          %v360 = vld [vmem:[#allocation3] sm:$0xff]
          %v361 = vmul.f32 %v360, 0.0033333334
          %v362 = vmul.f32 %v359, %v359
          %v363 = vsub.f32 %v361, %v362
          %v364 = vadd.f32 %v363, 1e-05
          %v365 = vrsqrt.pop %v364
          %367 = vrot.lane.b32.xlu0 %v365, 1
          %v368 = vpop.permute.xlu0 %367
          %v370 = vmul.f32 %v249, %v368
          %372 = vrot.lane.b32.xlu0 %v370, 127
          %v373 = vpop.permute.xlu0 %372
          %v375 = vmul.f32 %v359, %v373
          %377 = vrot.lane.b32.xlu0 %v375, 2
          %v378 = vpop.permute.xlu0 %377
          %v380 = vsub.f32 %v249, %v378
          %381 = vset.pattern.permute.xlu0 1
          %382 = vperm.xlu0 %381, %v370
          %v383 = vpop.permute.xlu0 %382
          %v385 = vmul.f32 %v337, %v383
          %387 = vset.pattern.permute.xlu0 2
          %388 = vperm.xlu0 %387, %v380
          %v389 = vpop.permute.xlu0 %388
          %v391 = vadd.f32 %v385, %v389
          %393 = vset.pattern.permute.xlu0 3
          %394 = vperm.xlu0 %393, %v250
          %v395 = vpop.permute.xlu0 %394
          %vm397 = vcmask 64512
          %v399 = vsel %vm397, %v247, 0
          %401 = vmatprep.subr.mxu0 0.0
          %402 = vmatpush1.msra.mxu0 0.0
          %403 = vmatprep.subr.mxu0 0.0
          %404 = vmatpush1.msra.mxu0 0.0
          %405 = vmatprep.subr.mxu0 0.0
          %406 = vmatpush1.msra.mxu0 0.0
          %407 = vmatprep.subr.mxu0 0.0
          %408 = vmatpush1.msra.mxu0 0.0
          %409 = vmatprep.subr.mxu0 0.0
          %410 = vmatpush1.msra.mxu0 0.0
          %411 = vmatprep.subr.mxu0 0.0
          %412 = vmatpush1.msra.mxu0 0.0
          %413 = vmatprep.subr.mxu0 0.0
          %414 = vmatpush1.msra.mxu0 0.0
          %415 = vmatprep.subr.mxu0 0.0
          %416 = vmatpush1.msra.mxu0 0.0
          %417 = vmatprep.subr.mxu0 0.0
          %418 = vmatpush1.msra.mxu0 0.0
          %419 = vmatprep.subr.mxu0 0.0
          %420 = vmatpush1.msra.mxu0 0.0
          %421 = vmatprep.subr.mxu0 0.0
          %422 = vmatpush1.msra.mxu0 0.0
          %423 = vmatprep.subr.mxu0 0.0
          %424 = vmatpush1.msra.mxu0 0.0
          %425 = vmatprep.subr.mxu0 0.0
          %426 = vmatpush1.msra.mxu0 0.0
          %427 = vmatprep.subr.mxu0 0.0
          %428 = vmatpush1.msra.mxu0 0.0
          %429 = vmatprep.subr.mxu0 0.0
          %430 = vmatpush1.msra.mxu0 0.0
          %431 = vmatprep.subr.mxu0 0.0
          %432 = vmatpush1.msra.mxu0 %v391
          %433 = vmatprep.subr.mxu0 0.0
          %434 = vmatpush2.msra.mxu0 0.0
          %435 = vmatprep.subr.mxu0 0.0
          %436 = vmatpush2.msra.mxu0 0.0
          %437 = vmatprep.subr.mxu0 0.0
          %438 = vmatpush2.msra.mxu0 0.0
          %439 = vmatprep.subr.mxu0 0.0
          %440 = vmatpush2.msra.mxu0 0.0
          %441 = vmatprep.subr.mxu0 0.0
          %442 = vmatpush2.msra.mxu0 0.0
          %443 = vmatprep.subr.mxu0 0.0
          %444 = vmatpush2.msra.mxu0 0.0
          %445 = vmatprep.subr.mxu0 0.0
          %446 = vmatpush2.msra.mxu0 0.0
          %447 = vmatprep.subr.mxu0 0.0
          %448 = vmatpush2.msra.mxu0 0.0
          %449 = vmatprep.subr.mxu0 0.0
          %450 = vmatpush2.msra.mxu0 0.0
          %451 = vmatprep.subr.mxu0 0.0
          %452 = vmatpush2.msra.mxu0 0.0
          %453 = vmatprep.subr.mxu0 0.0
          %454 = vmatpush2.msra.mxu0 0.0
          %455 = vmatprep.subr.mxu0 0.0
          %456 = vmatpush2.msra.mxu0 0.0
          %457 = vmatprep.subr.mxu0 0.0
          %458 = vmatpush2.msra.mxu0 0.0
          %459 = vmatprep.subr.mxu0 0.0
          %460 = vmatpush2.msra.mxu0 0.0
          %461 = vmatprep.subr.mxu0 0.0
          %462 = vmatpush2.msra.mxu0 0.0
          %463 = vmatprep.subr.mxu0 0.0
          %464 = vmatpush2.msra.mxu0 0.0
          %465 = vmatprep.mubr.f32.mxu0 0.0
          %466 = vmatmul.mubr.f32.gmra.mxu0 %v399
          %v467 = vpop.f32.mrf.mxu0
          %v468 = vadd.f32 %v395, %v467
          %v469 = vpop.f32.mrf.mxu0
          %470 = vdwg.mxu0
          %v471 = vmax.f32 %v468, 0.0
          %p472 = scmp.eq.s32.totalorder %s25, 1
          // Predicated region
          $region57: #{tpu_custom_call.1} parent=55 // pred_check
            %p473 = pneg %p472
          $region58: #{tpu_custom_call.1} parent=55 // pred_check_branch
            %475 = sbr.rel (%p473) target = $region60
          $region59: #{tpu_custom_call.1} parent=55 // pred_region
            %v476 = vmul.f32 %v471, %v245
            %v477 = vld [vmem:[#allocation4] sm:$0xf]
            %vm478 = vcmask 1043456
            %v479 = vsel %vm478, %v476, 0.0
            %480 = vadd.xlane.f32.xlu0 %v479
            %v481 = vpop.xlane.xlu0 %480
            %v482 = vadd.f32 %v477, %v481
            %vm483 = vcmask 3072
            %484 = vst.msk [vmem:[#allocation4] sm:$0xf] %vm483, %v482
            %v485 = vld [vmem:[#allocation5] sm:$0xf]
            %v486 = vmul.f32 %v476, %v476
            %v487 = vsel %vm478, %v486, 0.0
            %488 = vadd.xlane.f32.xlu0 %v487
            %v489 = vpop.xlane.xlu0 %488
            %v490 = vadd.f32 %v485, %v489
            %491 = vst.msk [vmem:[#allocation5] sm:$0xf] %vm483, %v490
          $region60: #{tpu_custom_call.1} parent=55 // pred_fallthru
            _
          %p492 = scmp.eq.s32.totalorder %s25, 2
          // Predicated region
          $region61: #{tpu_custom_call.1} parent=55 // pred_check
            %p493 = pneg %p492
          $region62: #{tpu_custom_call.1} parent=55 // pred_check_branch
            %495 = sbr.rel (%p493) target = $region64
          $region63: #{tpu_custom_call.1} parent=55 // pred_region
            %v496 = vld [vmem:[#allocation4] sm:$0xf]
            %v497 = vmul.f32 %v496, 0.0033333334
            %v498 = vld [vmem:[#allocation5] sm:$0xf]
            %v499 = vmul.f32 %v498, 0.0033333334
            %v500 = vmul.f32 %v497, %v497
            %v501 = vsub.f32 %v499, %v500
            %v502 = vadd.f32 %v501, 1e-05
            %v503 = vrsqrt.pop %v502
            %505 = vrot.lane.b32.xlu0 %v503, 4
            %v506 = vpop.permute.xlu0 %505
            %v508 = vmul.f32 %v250, %v506
            %510 = vrot.lane.b32.xlu0 %v508, 124
            %v511 = vpop.permute.xlu0 %510
            %v513 = vmul.f32 %v497, %v511
            %515 = vrot.lane.b32.xlu0 %v513, 5
            %v516 = vpop.permute.xlu0 %515
            %v518 = vsub.f32 %v250, %v516
            %519 = vset.pattern.permute.xlu0 4
            %520 = vperm.xlu0 %519, %v508
            %v521 = vpop.permute.xlu0 %520
            %v523 = vmul.f32 %v471, %v521
            %525 = vset.pattern.permute.xlu0 5
            %526 = vperm.xlu0 %525, %v518
            %v527 = vpop.permute.xlu0 %526
            %v529 = vadd.f32 %v523, %v527
            %531 = vset.pattern.permute.xlu0 0
            %532 = vperm.xlu0 %531, %v248
            %v533 = vpop.permute.xlu0 %532
            %v535 = vmul.f32 %v529, %v533
            %vm536 = vcmask 1043456
            %v537 = vsel %vm536, %v535, 0.0
            %v538 = vrot.slane %v537, 4
            %v539 = vadd.f32 %v537, %v538
            %v540 = vrot.slane %v539, 2
            %v541 = vadd.f32 %v539, %v540
            %v542 = vrot.slane %v541, 1
            %v543 = vadd.f32 %v541, %v542
            %545 = vset.pattern.permute.xlu0 6
            %546 = vperm.xlu0 %545, %v251
            %v547 = vpop.permute.xlu0 %546
            %v549 = vadd.f32 %v543, %v547
            %v550 = vxor.u32 %v549, 2147483648
            %v551 = vmul.f32 %v550, 1.442695
            %v552 = vpow.pop %v551
            %v553 = vadd.f32 %v552, 1.0
            %v554 = vrcp.pop %v553
            %v555 = vmul.f32 1.0, %v554
            %556 = vst [vmem:[%s225] sm:$0x1] %v555
          $region64: #{tpu_custom_call.1} parent=55 // pred_fallthru
            _
        $region56: #{tpu_custom_call.1} parent=31 // pred_fallthru
          _
        %s557 = sand.u32 %s109, 1
        %s558 = scalar_lea.sflag [#allocation8], %s557
        %s559 = sand.u32 %s109, 1
        %s560 = scalar_lea.vmem [#allocation12], %s559
        // Predicated region
        $region65: #{tpu_custom_call.1} parent=31 // pred_check
          %p561 = pneg %p119
        $region66: #{tpu_custom_call.1} parent=31 // pred_check_branch
          %563 = sbr.rel (%p561) target = $region68
        $region67: #{tpu_custom_call.1} parent=31 // pred_region
          %s565 = ssub.s32 16, 16
          %566 = vsyncadd %s558, %s565
          %s567 = smul.addr %s26, 16
          %s568 = scalar_lea.hbm %s3, %s567
          %s570 = sshll.u32 %s560, 4
          %s571 = int_to_ptr.vmem [resolvable:$true] %s570
          %573 = dma.vmem_to_hbm [thread:$0]  %s571, 16, %s568, %s558
        $region68: #{tpu_custom_call.1} parent=31 // pred_fallthru
          _
      $region32: #{tpu_custom_call.1} parent=5 // pred_fallthru
        _
      %p574 = scmp.le.s32.totalorder 2, %s16
      // Predicated region
      $region69: #{tpu_custom_call.1} parent=5 // pred_check
        %p575 = pneg %p574
      $region70: #{tpu_custom_call.1} parent=5 // pred_check_branch
        %577 = sbr.rel (%p575) target = $region72
      $region71: #{tpu_custom_call.1} parent=5 // pred_region
        %s578 = ssub.s32 %s16, 2
        // Predicated region
        $region73: #{tpu_custom_call.1} parent=71 // pred_check
          %p579 = pneg %p125
        $region74: #{tpu_custom_call.1} parent=71 // pred_check_branch
          %581 = sbr.rel (%p579) target = $region76
        $region75: #{tpu_custom_call.1} parent=71 // pred_region
          %s582 = sand.u32 %s110, 1
          %s583 = scalar_lea.sflag [#allocation8], %s582
          %s584 = sand.u32 %s110, 1
          %s585 = scalar_lea.vmem [#allocation12], %s584
          %586 = dma.done %s583, 16
        $region76: #{tpu_custom_call.1} parent=71 // pred_fallthru
          _
      $region72: #{tpu_custom_call.1} parent=5 // pred_fallthru
        _
    $region6: #{tpu_custom_call.1} parent=1 // loop_footer
      %s20 = sadd.s32 1, %s16
    $region7: #{tpu_custom_call.1} parent=1 // loop_footer_branch
      %15 = sbr.rel target = $region3
    $region8: #{tpu_custom_call.1} parent=1 // loop_exit
      _
    %587 = vsyncpa [#allocation7], 1
    %s588 = scalar_lea.sflag [#allocation7], 1
    %589 = vsyncpa %s588, 1
    %590 = vsyncpa [#allocation10], 1
    %591 = vsyncpa [#allocation8], 1
    %s592 = scalar_lea.sflag [#allocation8], 1
    %593 = vsyncpa %s592, 1

</llo_original>
